<compile_context>
chip_gen: v7x
topology: tpu7x:2x2x1
jax: 0.10.0
libtpu: 0.0.40
codegen_flags: <defaults>
</compile_context>

<pallas_src>
import jax
import jax.numpy as jnp
from jax import lax
from jax.experimental import pallas as pl
from jax.experimental.pallas import tpu as pltpu


def _round_up(x, m):
    return (x + m - 1) // m * m


# Contract last dim of x with last dim of the PyTorch-layout (O, D) weight:
# y[n, o] = sum_d x[n, d] * w[o, d]   (i.e. x @ w.T, done natively on the MXU).
_DN = (((1,), (1,)), ((), ()))


def _linear_small_kernel(x_ref, w_ref, b_ref, o_ref):
    """Single grid point; full (unpadded) operands resident in VMEM.

    x_ref: (N, D)   w_ref: (O, D)   b_ref: (1, O)   o_ref: (N, O)
    """
    o_ref[...] = (
        lax.dot_general(
            x_ref[...], w_ref[...],
            dimension_numbers=_DN,
            preferred_element_type=jnp.float32,
        )
        + b_ref[...]
    ).astype(o_ref.dtype)


def _linear_tiled_kernel(x_ref, w_ref, b_ref, o_ref, acc_ref):
    """(M//tm, O//tn, D//tk) grid; f32 accumulator; bias fused on last K step.

    x_ref: (tm, tk)   w_ref: (tn, tk)   b_ref: (1, tn)
    o_ref: (tm, tn)   acc_ref: (tm, tn) f32 scratch
    """
    k = pl.program_id(2)

    @pl.when(k == 0)
    def _():
        acc_ref[...] = jnp.zeros_like(acc_ref)

    acc_ref[...] += lax.dot_general(
        x_ref[...], w_ref[...],
        dimension_numbers=_DN,
        preferred_element_type=jnp.float32,
    )

    @pl.when(k == pl.num_programs(2) - 1)
    def _():
        o_ref[...] = (acc_ref[...] + b_ref[...]).astype(o_ref.dtype)


def _small_path(x2, weight, b2, N, D, O):
    """Everything fits comfortably in VMEM: one pallas_call, one grid point."""
    return pl.pallas_call(
        _linear_small_kernel,
        out_shape=jax.ShapeDtypeStruct((N, O), jnp.float32),
        in_specs=[
            pl.BlockSpec(memory_space=pltpu.MemorySpace.VMEM),
            pl.BlockSpec(memory_space=pltpu.MemorySpace.VMEM),
            pl.BlockSpec(memory_space=pltpu.MemorySpace.VMEM),
        ],
        out_specs=pl.BlockSpec(memory_space=pltpu.MemorySpace.VMEM),
    )(x2, weight, b2)


def _tiled_path(x2, weight, b2, N, D, O):
    """Large shapes: tiled grid, auto double-buffered DMA, f32 accumulator."""
    tm = min(256, _round_up(N, 8))
    tn = min(256, _round_up(O, 128))
    tk = min(512, _round_up(D, 128))

    N_p = _round_up(N, tm)
    O_p = _round_up(O, tn)
    D_p = _round_up(D, tk)

    # Zero-padding the contraction dim is exact; padded output rows/cols are
    # sliced off below.  At these (large) sizes the pad cost is amortized.
    x_p = jnp.pad(x2, ((0, N_p - N), (0, D_p - D)))
    w_p = jnp.pad(weight, ((0, O_p - O), (0, D_p - D)))
    b_p = jnp.pad(b2, ((0, 0), (0, O_p - O)))

    grid = (N_p // tm, O_p // tn, D_p // tk)

    y_p = pl.pallas_call(
        _linear_tiled_kernel,
        out_shape=jax.ShapeDtypeStruct((N_p, O_p), jnp.float32),
        grid_spec=pltpu.PrefetchScalarGridSpec(
            num_scalar_prefetch=0,
            grid=grid,
            in_specs=[
                pl.BlockSpec((tm, tk), lambda i, j, k: (i, k)),   # x tile
                pl.BlockSpec((tn, tk), lambda i, j, k: (j, k)),   # (O, D) weight tile
                pl.BlockSpec((1, tn), lambda i, j, k: (0, j)),    # bias tile
            ],
            out_specs=pl.BlockSpec((tm, tn), lambda i, j, k: (i, j)),
            scratch_shapes=[pltpu.VMEM((tm, tn), jnp.float32)],
        ),
        compiler_params=pltpu.CompilerParams(
            dimension_semantics=("parallel", "parallel", "arbitrary")),
    )(x_p, w_p, b_p)
    return y_p[:N, :O]


@jax.jit
def linear_layer(x, weight, bias):
    """PyTorch nn.Linear forward: y = x @ weight.T + bias.

    x:      (..., D) float32
    weight: (O, D)   float32 (PyTorch layout, NOT transposed)
    bias:   (O,)     float32
    returns (..., O) float32
    """
    orig_shape = x.shape
    D = orig_shape[-1]
    O = weight.shape[0]

    x2 = x.reshape(-1, D).astype(jnp.float32)
    N = x2.shape[0]
    w = weight.astype(jnp.float32)
    b2 = bias.reshape(1, O).astype(jnp.float32)

    # Static (trace-time) dispatch: single-block kernel when all operands fit
    # comfortably in VMEM, tiled pipeline otherwise.
    total_bytes = 4 * (N * D + O * D + N * O + O)
    if total_bytes <= (4 << 20) and max(N, D, O) <= 2048:
        y = _small_path(x2, w, b2, N, D, O)
    else:
        y = _tiled_path(x2, w, b2, N, D, O)

    return y.reshape(orig_shape[:-1] + (O,))


if __name__ == "__main__":
    INPUT_DIM = 32
    NUM_CLASSES = 64
    BATCH = 4

    key = jax.random.PRNGKey(0)
    kx, kw, kb = jax.random.split(key, 3)

    # PyTorch nn.Linear default init: uniform(-1/sqrt(in_features), 1/sqrt(in_features))
    bound = 1.0 / float(jnp.sqrt(INPUT_DIM))
    weight = jax.random.uniform(kw, (NUM_CLASSES, INPUT_DIM), jnp.float32, -bound, bound)
    bias = jax.random.uniform(kb, (NUM_CLASSES,), jnp.float32, -bound, bound)
    x = jax.random.normal(kx, (BATCH, INPUT_DIM), jnp.float32)

    out = jax.block_until_ready(linear_layer(x, weight, bias))
    assert out.shape == (BATCH, NUM_CLASSES), out.shape

    ref = x @ weight.T + bias
    assert jnp.allclose(out, ref, atol=1e-5, rtol=1e-5), float(jnp.max(jnp.abs(out - ref)))

    print("KERNEL_OK")
</pallas_src>

<mosaic_0001>
module attributes {stable_mosaic.version = 11 : i64} {
  func.func @_linear_small_kernel(%arg0: memref<4x32xf32, #tpu.memory_space<vmem>>, %arg1: memref<64x32xf32, #tpu.memory_space<vmem>>, %arg2: memref<1x64xf32, #tpu.memory_space<vmem>>, %arg3: memref<4x64xf32, #tpu.memory_space<vmem>>) attributes {dimension_semantics = [], scalar_prefetch = 0 : i64, scratch_operands = 0 : i64, tpu.core_type = #tpu.core_type<tc>} {
    %c0 = arith.constant 0 : index
    %c0_0 = arith.constant 0 : index
    %0 = vector.load %arg0[%c0, %c0_0] : memref<4x32xf32, #tpu.memory_space<vmem>>, vector<4x32xf32>
    %c0_1 = arith.constant 0 : index
    %c0_2 = arith.constant 0 : index
    %1 = vector.load %arg1[%c0_1, %c0_2] : memref<64x32xf32, #tpu.memory_space<vmem>>, vector<64x32xf32>
    %cst = arith.constant dense<0.000000e+00> : vector<4x64xf32>
    %2 = tpu.matmul %0, %1, %cst {dimension_numbers = #tpu.dot_dimension_numbers<[1], [1], [0], [0], [0, 0, 1, 0], [], []>} : vector<4x32xf32>, vector<64x32xf32>, vector<4x64xf32> -> vector<4x64xf32>
    %c0_3 = arith.constant 0 : index
    %c0_4 = arith.constant 0 : index
    %3 = vector.load %arg2[%c0_3, %c0_4] : memref<1x64xf32, #tpu.memory_space<vmem>>, vector<1x64xf32>
    %4 = vector.broadcast %3 : vector<1x64xf32> to vector<4x64xf32>
    %5 = arith.addf %2, %4 : vector<4x64xf32>
    %c0_5 = arith.constant 0 : index
    %c0_6 = arith.constant 0 : index
    %6 = vector.load %arg3[%c0_5, %c0_6] : memref<4x64xf32, #tpu.memory_space<vmem>>, vector<4x64xf32>
    tpu.vector_store %arg3[%c0_5, %c0_6], %5 {strides = array<i32>} : memref<4x64xf32, #tpu.memory_space<vmem>>, vector<4x64xf32>,
    return
  }
}

</mosaic_0001>

<llo_original>
// kernel: linear_layer.1
$region0: #{linear_layer.1}
  #allocation0 [shape = 'u32[]', space=smem, size = 0x4, offset = 0x4, fixed_abs, tag = 'smem constant byte address 0x4 - core index']
  #allocation1 [shape = 'u32[144,128]{1,0:T(1,128)}', space=vmem, size = 0x12000, scoped, tag = 'internal scratch']
  %s0 = inlined_call_operand.vmem [shape: f32[4,32], index: 0, kind: input, shape index: {}]
  %s1 = inlined_call_operand.vmem [shape: f32[64,32], index: 1, kind: input, shape index: {}]
  %s2 = inlined_call_operand.vmem [shape: f32[1,64], index: 2, kind: input, shape index: {}]
  %s3 = inlined_call_operand.hbm [shape: f32[4,64], index: 3, kind: output, shape index: {}]
  %s4 = sld [smem:[#allocation0]]
  $region22: #{linear_layer.1} parent=0
    _
  %s6 = ssub.s32 1, %s4
  %s7 = scalar_select 0, %s6, %s4
  $region1: #{linear_layer.1} parent=0
    #allocation2 [shape = 'u8[2048]{0}', space=vmem, size = 0x800, scoped, tag = 'output window, operand 0, single buffered']
    #allocation3 [shape = 's32[1]{0}', space=sflag, size = 0x4, scoped, tag = 'scoped memory for linear_layer.1']
    %8 = vsyncpa [#allocation3], 0
    // Predicated region
    $region2: #{linear_layer.1} parent=1 // pred_check
      _
    $region3: #{linear_layer.1} parent=1 // pred_check_branch
      %10 = sbr.rel (0) target = $region5
    $region4: #{linear_layer.1} parent=1 // pred_region
      _
    $region5: #{linear_layer.1} parent=1 // pred_fallthru
      _
    // Predicated region
    $region6: #{linear_layer.1} parent=1 // pred_check
      _
    $region7: #{linear_layer.1} parent=1 // pred_check_branch
      %12 = sbr.rel (0) target = $region9
    $region8: #{linear_layer.1} parent=1 // pred_region
      _
    $region9: #{linear_layer.1} parent=1 // pred_fallthru
      _
    // Predicated region
    $region10: #{linear_layer.1} parent=1 // pred_check
      _
    $region11: #{linear_layer.1} parent=1 // pred_check_branch
      %14 = sbr.rel (0) target = $region13
    $region12: #{linear_layer.1} parent=1 // pred_region
      _
    $region13: #{linear_layer.1} parent=1 // pred_fallthru
      _
    %v15 = vld [vmem:[%s0] sm:$0xf]
    %v16 = vld [vmem:[%s1] sm:$0xff]
    %v17 = vld [vmem:[%s1 + $0x8] sm:$0xff]
    %v18 = vld [vmem:[%s1 + $0x10] sm:$0xff]
    %v19 = vld [vmem:[%s1 + $0x18] sm:$0xff]
    %v20 = vld [vmem:[%s1 + $0x20] sm:$0xff]
    %v21 = vld [vmem:[%s1 + $0x28] sm:$0xff]
    %v22 = vld [vmem:[%s1 + $0x30] sm:$0xff]
    %v23 = vld [vmem:[%s1 + $0x38] sm:$0xff]
    %v24 = vld [vmem:[%s2] sm:$0x1]
    %v26 = vlaneseq
    %v27 = vshrl.u32 %v26, 7
    %v28 = vsub.s32 0, %v27
    %v29 = vrot.slane %v24, %v28
    %vm31 = vcmask 261120
    %v33 = vsel %vm31, %v15, 0
    %v36 = vsel %vm31, %v16, 0
    %v39 = vsel %vm31, %v17, 0
    %v42 = vsel %vm31, %v18, 0
    %v45 = vsel %vm31, %v19, 0
    %v48 = vsel %vm31, %v20, 0
    %v51 = vsel %vm31, %v21, 0
    %v54 = vsel %vm31, %v22, 0
    %v57 = vsel %vm31, %v23, 0
    %59 = vmatprep.subr.mxu0 0.0
    %60 = vmatpush1.xpose.msra.mxu0 %v36
    %61 = vmatprep.subr.mxu0 0.0
    %62 = vmatpush1.xpose.msra.mxu0 %v39
    %63 = vmatprep.subr.mxu0 0.0
    %64 = vmatpush1.xpose.msra.mxu0 %v42
    %65 = vmatprep.subr.mxu0 0.0
    %66 = vmatpush1.xpose.msra.mxu0 %v45
    %67 = vmatprep.subr.mxu0 0.0
    %68 = vmatpush1.xpose.msra.mxu0 %v48
    %69 = vmatprep.subr.mxu0 0.0
    %70 = vmatpush1.xpose.msra.mxu0 %v51
    %71 = vmatprep.subr.mxu0 0.0
    %72 = vmatpush1.xpose.msra.mxu0 %v54
    %73 = vmatprep.subr.mxu0 0.0
    %74 = vmatpush1.xpose.msra.mxu0 %v57
    %75 = vmatprep.subr.mxu0 0.0
    %76 = vmatpush1.xpose.msra.mxu0 0.0
    %77 = vmatprep.subr.mxu0 0.0
    %78 = vmatpush1.xpose.msra.mxu0 0.0
    %79 = vmatprep.subr.mxu0 0.0
    %80 = vmatpush1.xpose.msra.mxu0 0.0
    %81 = vmatprep.subr.mxu0 0.0
    %82 = vmatpush1.xpose.msra.mxu0 0.0
    %83 = vmatprep.subr.mxu0 0.0
    %84 = vmatpush1.xpose.msra.mxu0 0.0
    %85 = vmatprep.subr.mxu0 0.0
    %86 = vmatpush1.xpose.msra.mxu0 0.0
    %87 = vmatprep.subr.mxu0 0.0
    %88 = vmatpush1.xpose.msra.mxu0 0.0
    %89 = vmatprep.subr.mxu0 0.0
    %90 = vmatpush1.xpose.msra.mxu0 0.0
    %91 = vmatprep.subr.mxu0 0.0
    %92 = vmatpush1.xpose.msra.mxu0 0.0
    %93 = vmatprep.subr.mxu0 0.0
    %94 = vmatpush1.xpose.msra.mxu0 0.0
    %95 = vmatprep.subr.mxu0 0.0
    %96 = vmatpush1.xpose.msra.mxu0 0.0
    %97 = vmatprep.subr.mxu0 0.0
    %98 = vmatpush1.xpose.msra.mxu0 0.0
    %99 = vmatprep.subr.mxu0 0.0
    %100 = vmatpush1.xpose.msra.mxu0 0.0
    %101 = vmatprep.subr.mxu0 0.0
    %102 = vmatpush1.xpose.msra.mxu0 0.0
    %103 = vmatprep.subr.mxu0 0.0
    %104 = vmatpush1.xpose.msra.mxu0 0.0
    %105 = vmatprep.subr.mxu0 0.0
    %106 = vmatpush1.xpose.msra.mxu0 0.0
    %107 = vmatprep.subr.mxu0 0.0
    %108 = vmatpush1.xpose.msra.mxu0 0.0
    %109 = vmatprep.subr.mxu0 0.0
    %110 = vmatpush1.xpose.msra.mxu0 0.0
    %111 = vmatprep.subr.mxu0 0.0
    %112 = vmatpush1.xpose.msra.mxu0 0.0
    %113 = vmatprep.subr.mxu0 0.0
    %114 = vmatpush1.xpose.msra.mxu0 0.0
    %115 = vmatprep.subr.mxu0 0.0
    %116 = vmatpush1.xpose.msra.mxu0 0.0
    %117 = vmatprep.subr.mxu0 0.0
    %118 = vmatpush1.xpose.msra.mxu0 0.0
    %119 = vmatprep.subr.mxu0 0.0
    %120 = vmatpush1.xpose.msra.mxu0 0.0
    %121 = vmatprep.subr.mxu0 0.0
    %122 = vmatpush1.xpose.msra.mxu0 0.0
    %123 = vmatprep.mubr.f32.mxu0 0.0
    %124 = vmatmul.mubr.f32.gmra.mrb[0].mxu0 %v33
    %v125 = vpop.f32.mrb[0].mxu0
    %v126 = vadd.f32 %v29, %v125
    %v127 = vpop.f32.mrb[0].mxu0
    %128 = vdwg.mxu0
    %vm129 = vcmask 519168
    %130 = vst.msk [vmem:[#allocation2] sm:$0xf] %vm129, %v126
    // Predicated region
    $region14: #{linear_layer.1} parent=1 // pred_check
      _
    $region15: #{linear_layer.1} parent=1 // pred_check_branch
      %132 = sbr.rel (0) target = $region17
    $region16: #{linear_layer.1} parent=1 // pred_region
      %s134 = ssub.s32 64, 64
      %135 = vsyncadd [#allocation3], %s134
      %s137 = sshll.u32 [#allocation2], 4
      %s138 = int_to_ptr.vmem [resolvable:$true] %s137
      %140 = dma.vmem_to_hbm [thread:$0]  %s138, 64, %s3, [#allocation3]
    $region17: #{linear_layer.1} parent=1 // pred_fallthru
      _
    // Predicated region
    $region18: #{linear_layer.1} parent=1 // pred_check
      _
    $region19: #{linear_layer.1} parent=1 // pred_check_branch
      %142 = sbr.rel (0) target = $region21
    $region20: #{linear_layer.1} parent=1 // pred_region
      %143 = dma.done [#allocation3], 64
    $region21: #{linear_layer.1} parent=1 // pred_fallthru
      _
    %144 = vsyncpa [#allocation3], 1

</llo_original>
